<compile_context>
chip_gen: v7x
topology: tpu7x:2x2x1
jax: 0.10.0
libtpu: 0.0.40
codegen_flags: <defaults>
</compile_context>

<pallas_src>
import jax
import jax.numpy as jnp
from jax.experimental import pallas as pl
from jax.experimental.pallas import tpu as pltpu

LANES = 128
CHUNK_ROWS = 512                          # in-kernel chunk: bounds temporaries to ~256 KiB/input
BLOCK_BYTES_PER_INPUT = 4 * 1024 * 1024   # DMA block budget per input per grid step (2-4 MiB rec.)


def _device_kind():
    try:
        return jax.devices()[0].device_kind.lower()
    except Exception:
        return ""


def _tensorcores_per_device(kind):
    # Chips exposing two TensorCores behind a single JAX device (v4/v5p megacore,
    # v7x dual-TC).  v5e / v6e are single-core -> no split.
    if any(tag in kind for tag in ("v7", "7x", "v5p", "v4")):
        return 2
    return 1


def _dimension_semantics(splits, kind):
    if splits > 1 and ("v7" in kind or "7x" in kind):
        # Explicit per-core sharding of the leading grid axis on dual-TC chips;
        # fall back to the classic megacore "parallel" hint if unavailable.
        return (getattr(pltpu, "CORE_PARALLEL", "parallel"), "arbitrary")
    if splits > 1:
        return ("parallel", "arbitrary")
    return ("arbitrary", "arbitrary")


def _make_kernel(*, tile_rows, chunk_rows, steps, full_rows, rem, needs_mask):
    """Builds the streaming-sum kernel for sum(p), sum(t), sum(p*t)."""
    n_chunks = tile_rows // chunk_rows

    def kernel(x_ref, t_ref, sp_ref, st_ref, stp_ref, acc_p, acc_t, acc_pt):
        i = pl.program_id(1)

        @pl.when(i == 0)
        def _():
            acc_p[...] = jnp.zeros_like(acc_p)
            acc_t[...] = jnp.zeros_like(acc_t)
            acc_pt[...] = jnp.zeros_like(acc_pt)

        if needs_mask:
            # First global row covered by this *logical* block (may point past the
            # end of the array for clamped duplicate blocks of an uneven core
            # split; those end up fully masked).
            row0 = (pl.program_id(0) * steps + i) * tile_rows
            row_iota = jax.lax.broadcasted_iota(jnp.int32, (chunk_rows, LANES), 0)
            lane_iota = jax.lax.broadcasted_iota(jnp.int32, (chunk_rows, LANES), 1)

        def process_chunk(r0):
            x = x_ref[pl.ds(r0, chunk_rows), :].astype(jnp.float32)
            t = t_ref[pl.ds(r0, chunk_rows), :].astype(jnp.float32)
            # sigmoid(x) = 0.5 * (1 + tanh(x/2)): one EUP transcendental / element.
            p = 0.5 * (1.0 + jnp.tanh(0.5 * x))

            def accumulate(p_v, t_v):
                # Element-wise VALU accumulation; no per-chunk XLU reduction.
                acc_p[...] += p_v
                acc_t[...] += t_v
                acc_pt[...] += p_v * t_v

            if not needs_mask:
                accumulate(p, t)
                return

            chunk_row0 = row0 + r0
            fully_valid = chunk_row0 + chunk_rows <= full_rows

            @pl.when(fully_valid)
            def _():
                accumulate(p, t)

            @pl.when(jnp.logical_not(fully_valid))
            def _():
                g_row = chunk_row0 + row_iota
                mask = g_row < full_rows
                if rem:
                    mask = mask | ((g_row == full_rows) & (lane_iota < rem))
                accumulate(jnp.where(mask, p, 0.0), jnp.where(mask, t, 0.0))

        if n_chunks == 1:
            process_chunk(0)
        else:
            def body(ci, carry):
                process_chunk(pl.multiple_of(ci * chunk_rows, chunk_rows))
                return carry
            jax.lax.fori_loop(0, n_chunks, body, 0)

        @pl.when(i == steps - 1)
        def _():
            # Single cross-lane/sublane reduction per core, once at the end.
            sp_ref[...] = jnp.sum(acc_p[...]).reshape(1, 1, 1)
            st_ref[...] = jnp.sum(acc_t[...]).reshape(1, 1, 1)
            stp_ref[...] = jnp.sum(acc_pt[...]).reshape(1, 1, 1)

    return kernel


def focal_tversky_loss(inputs, targets, *, alpha=0.3, beta=0.7, gamma=0.75,
                       smooth=1.0, num_buffers=2):
    """Focal Tversky loss, matching FocalTverskyLoss.forward(inputs, targets, smooth=1).

    `inputs` are raw logits, `targets` the (binary) ground truth.  Targets may be
    supplied in their narrowest native dtype (bool / int8 / bf16 / f32); they are
    streamed from HBM as-is and cast to f32 per chunk in VMEM, so narrow target
    dtypes directly cut HBM traffic.  `num_buffers` (>=2) is a tuning knob for the
    input pipeline depth (sweep 2 vs 3 on DMA-bound shapes).
    """
    n = int(inputs.size)
    if n == 0:
        return jnp.float32(0.0)

    x = inputs.reshape(-1)
    t = targets.reshape(-1)

    full_rows, rem = divmod(n, LANES)
    pad = (LANES - rem) % LANES
    if pad:
        # Rare (numel not a multiple of 128): one small pad copy so the flat array
        # reshapes to (rows, 128) for free; the pad lanes are masked in-kernel.
        x = jnp.pad(x, (0, pad))
        t = jnp.pad(t, (0, pad))
    rows_total = (n + pad) // LANES

    itemsize = max(jnp.dtype(x.dtype).itemsize, jnp.dtype(t.dtype).itemsize)
    if rows_total <= CHUNK_ROWS:
        tile_rows = rows_total           # block == full array extent (always legal)
        chunk_rows = rows_total
    else:
        budget_rows = BLOCK_BYTES_PER_INPUT // (LANES * itemsize)   # multiple of 512
        tile_rows = min(budget_rows, (rows_total // CHUNK_ROWS) * CHUNK_ROWS)
        chunk_rows = CHUNK_ROWS

    n_blocks = -(-rows_total // tile_rows)
    kind = _device_kind()
    cores = _tensorcores_per_device(kind)
    splits = cores if (cores > 1 and n_blocks > 1) else 1
    steps = -(-n_blocks // splits)

    needs_mask = (rem != 0
                  or rows_total % tile_rows != 0
                  or splits * steps != n_blocks)

    if splits * steps == n_blocks:
        in_index_map = lambda c, i: (c * steps + i, 0)
    else:
        # Uneven core split: clamp duplicate trailing logical block(s) onto the last
        # real block; their contribution is masked to zero inside the kernel.
        in_index_map = lambda c, i: (jnp.minimum(c * steps + i, n_blocks - 1), 0)

    def in_spec():
        if num_buffers == 2:
            return pl.BlockSpec((tile_rows, LANES), in_index_map)
        return pl.BlockSpec((tile_rows, LANES), in_index_map,
                            pipeline_mode=pl.Buffered(num_buffers))

    kernel = _make_kernel(tile_rows=tile_rows, chunk_rows=chunk_rows, steps=steps,
                          full_rows=full_rows, rem=rem, needs_mask=needs_mask)

    x2 = x.reshape(rows_total, LANES)
    t2 = t.reshape(rows_total, LANES)

    block_in_bytes = tile_rows * LANES * (jnp.dtype(x.dtype).itemsize
                                          + jnp.dtype(t.dtype).itemsize)
    # Explicit scoped-VMEM budget: input pipeline buffers + headroom for chunk-sized
    # temporaries and accumulators.  Safe on all generations (<= 48 MiB).
    vmem_limit = int(min(48 * 1024 * 1024,
                         num_buffers * block_in_bytes + 16 * 1024 * 1024))

    out_sds = jax.ShapeDtypeStruct((splits, 1, 1), jnp.float32)
    out_spec = pl.BlockSpec((1, 1, 1), lambda c, i: (c, 0, 0))

    sp, st, stp = pl.pallas_call(
        kernel,
        out_shape=(out_sds, out_sds, out_sds),
        grid_spec=pltpu.PrefetchScalarGridSpec(
            num_scalar_prefetch=0,
            grid=(splits, steps),
            in_specs=[in_spec(), in_spec()],
            out_specs=[out_spec, out_spec, out_spec],
            scratch_shapes=[pltpu.VMEM((chunk_rows, LANES), jnp.float32)] * 3,
        ),
        compiler_params=pltpu.CompilerParams(
            dimension_semantics=_dimension_semantics(splits, kind),
            vmem_limit_bytes=vmem_limit),
        cost_estimate=pl.CostEstimate(
            flops=8 * n,
            transcendentals=n,
            bytes_accessed=int(block_in_bytes) * n_blocks),
    )(x2, t2)

    sum_p = jnp.sum(sp)
    sum_t = jnp.sum(st)
    sum_pt = jnp.sum(stp)

    tp = sum_pt
    fp = jnp.maximum(sum_p - sum_pt, 0.0)   # sum((1 - t) * p), clamped vs f32 rounding
    fn = jnp.maximum(sum_t - sum_pt, 0.0)   # sum(t * (1 - p)), clamped vs f32 rounding
    tversky = (tp + smooth) / (tp + alpha * fp + beta * fn + smooth)
    return (1.0 - tversky) ** gamma


def _reference(inputs, targets, alpha=0.3, beta=0.7, gamma=0.75, smooth=1.0):
    p = jax.nn.sigmoid(inputs.reshape(-1).astype(jnp.float32))
    t = targets.reshape(-1).astype(jnp.float32)
    tp = jnp.sum(p * t)
    fp = jnp.sum((1.0 - t) * p)
    fn = jnp.sum(t * (1.0 - p))
    tversky = (tp + smooth) / (tp + alpha * fp + beta * fn + smooth)
    return (1.0 - tversky) ** gamma


if __name__ == "__main__":
    key = jax.random.PRNGKey(0)
    k1, k2 = jax.random.split(key)
    # Segmentation logits + binary targets, NCHW: (batch=2, channels=4, 16, 16)
    inputs = jax.random.normal(k1, (2, 4, 16, 16), dtype=jnp.float32)
    targets = (jax.random.uniform(k2, (2, 4, 16, 16)) > 0.5).astype(jnp.float32)

    loss = jax.block_until_ready(focal_tversky_loss(inputs, targets))
    ref = _reference(inputs, targets)

    assert jnp.allclose(loss, ref, rtol=1e-4, atol=1e-5), (loss, ref)
    print("KERNEL_OK")
</pallas_src>

<mosaic_0001>
module attributes {stable_mosaic.version = 11 : i64} {
  func.func @kernel(%arg0: i32, %arg1: i32, %arg2: memref<16x128xf32, #tpu.memory_space<vmem>>, %arg3: memref<16x128xf32, #tpu.memory_space<vmem>>, %arg4: memref<1x1x1xf32, #tpu.memory_space<vmem>>, %arg5: memref<1x1x1xf32, #tpu.memory_space<vmem>>, %arg6: memref<1x1x1xf32, #tpu.memory_space<vmem>>, %arg7: memref<16x128xf32, #tpu.memory_space<vmem>>, %arg8: memref<16x128xf32, #tpu.memory_space<vmem>>, %arg9: memref<16x128xf32, #tpu.memory_space<vmem>>) attributes {dimension_semantics = [#tpu.dimension_semantics<arbitrary>, #tpu.dimension_semantics<arbitrary>], iteration_bounds = array<i64: 1, 1>, scalar_prefetch = 0 : i64, scratch_operands = 3 : i64, tpu.core_type = #tpu.core_type<tc>, window_params = [{transform_indices = @transform_0, window_bounds = array<i64: 16, 128>}, {transform_indices = @transform_1, window_bounds = array<i64: 16, 128>}, {transform_indices = @transform_2, window_bounds = array<i64: 1, 1, 1>}, {transform_indices = @transform_3, window_bounds = array<i64: 1, 1, 1>}, {transform_indices = @transform_4, window_bounds = array<i64: 1, 1, 1>}]} {
    %c0_i32 = arith.constant 0 : i32
    %0 = arith.cmpi eq, %arg1, %c0_i32 : i32
    %1 = arith.extui %0 : i1 to i32
    %c0_i32_0 = arith.constant 0 : i32
    %2 = arith.cmpi ne, %1, %c0_i32_0 : i32
    scf.if %2 {
      %cst_20 = arith.constant 0.000000e+00 : f32
      %25 = vector.broadcast %cst_20 : f32 to vector<16x128xf32>
      %c0_21 = arith.constant 0 : index
      %c0_22 = arith.constant 0 : index
      %26 = vector.load %arg7[%c0_21, %c0_22] : memref<16x128xf32, #tpu.memory_space<vmem>>, vector<16x128xf32>
      tpu.vector_store %arg7[%c0_21, %c0_22], %25 {strides = array<i32>} : memref<16x128xf32, #tpu.memory_space<vmem>>, vector<16x128xf32>,
      %cst_23 = arith.constant 0.000000e+00 : f32
      %27 = vector.broadcast %cst_23 : f32 to vector<16x128xf32>
      %c0_24 = arith.constant 0 : index
      %c0_25 = arith.constant 0 : index
      %28 = vector.load %arg8[%c0_24, %c0_25] : memref<16x128xf32, #tpu.memory_space<vmem>>, vector<16x128xf32>
      tpu.vector_store %arg8[%c0_24, %c0_25], %27 {strides = array<i32>} : memref<16x128xf32, #tpu.memory_space<vmem>>, vector<16x128xf32>,
      %cst_26 = arith.constant 0.000000e+00 : f32
      %29 = vector.broadcast %cst_26 : f32 to vector<16x128xf32>
      %c0_27 = arith.constant 0 : index
      %c0_28 = arith.constant 0 : index
      %30 = vector.load %arg9[%c0_27, %c0_28] : memref<16x128xf32, #tpu.memory_space<vmem>>, vector<16x128xf32>
      tpu.vector_store %arg9[%c0_27, %c0_28], %29 {strides = array<i32>} : memref<16x128xf32, #tpu.memory_space<vmem>>, vector<16x128xf32>,
    } else {
    }
    %c0 = arith.constant 0 : index
    %c0_1 = arith.constant 0 : index
    %3 = vector.load %arg2[%c0, %c0_1] : memref<16x128xf32, #tpu.memory_space<vmem>>, vector<16x128xf32>
    %c0_2 = arith.constant 0 : index
    %c0_3 = arith.constant 0 : index
    %4 = vector.load %arg3[%c0_2, %c0_3] : memref<16x128xf32, #tpu.memory_space<vmem>>, vector<16x128xf32>
    %cst = arith.constant 5.000000e-01 : f32
    %5 = vector.broadcast %cst : f32 to vector<16x128xf32>
    %6 = arith.mulf %5, %3 : vector<16x128xf32>
    %7 = math.tanh %6 : vector<16x128xf32>
    %cst_4 = arith.constant 1.000000e+00 : f32
    %8 = vector.broadcast %cst_4 : f32 to vector<16x128xf32>
    %9 = arith.addf %8, %7 : vector<16x128xf32>
    %cst_5 = arith.constant 5.000000e-01 : f32
    %10 = vector.broadcast %cst_5 : f32 to vector<16x128xf32>
    %11 = arith.mulf %10, %9 : vector<16x128xf32>
    %c0_6 = arith.constant 0 : index
    %c0_7 = arith.constant 0 : index
    %12 = vector.load %arg7[%c0_6, %c0_7] : memref<16x128xf32, #tpu.memory_space<vmem>>, vector<16x128xf32>
    %13 = arith.addf %12, %11 : vector<16x128xf32>
    %c0_8 = arith.constant 0 : index
    %c0_9 = arith.constant 0 : index
    %14 = vector.load %arg7[%c0_8, %c0_9] : memref<16x128xf32, #tpu.memory_space<vmem>>, vector<16x128xf32>
    tpu.vector_store %arg7[%c0_8, %c0_9], %13 {strides = array<i32>} : memref<16x128xf32, #tpu.memory_space<vmem>>, vector<16x128xf32>,
    %c0_10 = arith.constant 0 : index
    %c0_11 = arith.constant 0 : index
    %15 = vector.load %arg8[%c0_10, %c0_11] : memref<16x128xf32, #tpu.memory_space<vmem>>, vector<16x128xf32>
    %16 = arith.addf %15, %4 : vector<16x128xf32>
    %c0_12 = arith.constant 0 : index
    %c0_13 = arith.constant 0 : index
    %17 = vector.load %arg8[%c0_12, %c0_13] : memref<16x128xf32, #tpu.memory_space<vmem>>, vector<16x128xf32>
    tpu.vector_store %arg8[%c0_12, %c0_13], %16 {strides = array<i32>} : memref<16x128xf32, #tpu.memory_space<vmem>>, vector<16x128xf32>,
    %c0_14 = arith.constant 0 : index
    %c0_15 = arith.constant 0 : index
    %18 = vector.load %arg9[%c0_14, %c0_15] : memref<16x128xf32, #tpu.memory_space<vmem>>, vector<16x128xf32>
    %19 = arith.mulf %11, %4 : vector<16x128xf32>
    %20 = arith.addf %18, %19 : vector<16x128xf32>
    %c0_16 = arith.constant 0 : index
    %c0_17 = arith.constant 0 : index
    %21 = vector.load %arg9[%c0_16, %c0_17] : memref<16x128xf32, #tpu.memory_space<vmem>>, vector<16x128xf32>
    tpu.vector_store %arg9[%c0_16, %c0_17], %20 {strides = array<i32>} : memref<16x128xf32, #tpu.memory_space<vmem>>, vector<16x128xf32>,
    %c0_i32_18 = arith.constant 0 : i32
    %22 = arith.cmpi eq, %arg1, %c0_i32_18 : i32
    %23 = arith.extui %22 : i1 to i32
    %c0_i32_19 = arith.constant 0 : i32
    %24 = arith.cmpi ne, %23, %c0_i32_19 : i32
    scf.if %24 {
      %c0_20 = arith.constant 0 : index
      %c0_21 = arith.constant 0 : index
      %25 = vector.load %arg7[%c0_20, %c0_21] : memref<16x128xf32, #tpu.memory_space<vmem>>, vector<16x128xf32>
      %26 = vector.shape_cast %25 : vector<16x128xf32> to vector<1x16x128xf32>
      %cst_22 = arith.constant dense<0.000000e+00> : vector<1xf32>
      %27 = vector.multi_reduction <add>, %26, %cst_22 [1, 2] : vector<1x16x128xf32> to vector<1xf32>
      %28 = vector.shape_cast %27 : vector<1xf32> to vector<1x1x1xf32>
      %29 = vector.extract %28[0, 0, 0] : f32 from vector<1x1x1xf32>
      %30 = vector.broadcast %29 : f32 to vector<1x1x1xf32>
      %c0_23 = arith.constant 0 : index
      %c0_24 = arith.constant 0 : index
      %c0_25 = arith.constant 0 : index
      %31 = vector.load %arg4[%c0_23, %c0_24, %c0_25] : memref<1x1x1xf32, #tpu.memory_space<vmem>>, vector<1x1x1xf32>
      tpu.vector_store %arg4[%c0_23, %c0_24, %c0_25], %30 {strides = array<i32>} : memref<1x1x1xf32, #tpu.memory_space<vmem>>, vector<1x1x1xf32>,
      %c0_26 = arith.constant 0 : index
      %c0_27 = arith.constant 0 : index
      %32 = vector.load %arg8[%c0_26, %c0_27] : memref<16x128xf32, #tpu.memory_space<vmem>>, vector<16x128xf32>
      %33 = vector.shape_cast %32 : vector<16x128xf32> to vector<1x16x128xf32>
      %cst_28 = arith.constant dense<0.000000e+00> : vector<1xf32>
      %34 = vector.multi_reduction <add>, %33, %cst_28 [1, 2] : vector<1x16x128xf32> to vector<1xf32>
      %35 = vector.shape_cast %34 : vector<1xf32> to vector<1x1x1xf32>
      %36 = vector.extract %35[0, 0, 0] : f32 from vector<1x1x1xf32>
      %37 = vector.broadcast %36 : f32 to vector<1x1x1xf32>
      %c0_29 = arith.constant 0 : index
      %c0_30 = arith.constant 0 : index
      %c0_31 = arith.constant 0 : index
      %38 = vector.load %arg5[%c0_29, %c0_30, %c0_31] : memref<1x1x1xf32, #tpu.memory_space<vmem>>, vector<1x1x1xf32>
      tpu.vector_store %arg5[%c0_29, %c0_30, %c0_31], %37 {strides = array<i32>} : memref<1x1x1xf32, #tpu.memory_space<vmem>>, vector<1x1x1xf32>,
      %c0_32 = arith.constant 0 : index
      %c0_33 = arith.constant 0 : index
      %39 = vector.load %arg9[%c0_32, %c0_33] : memref<16x128xf32, #tpu.memory_space<vmem>>, vector<16x128xf32>
      %40 = vector.shape_cast %39 : vector<16x128xf32> to vector<1x16x128xf32>
      %cst_34 = arith.constant dense<0.000000e+00> : vector<1xf32>
      %41 = vector.multi_reduction <add>, %40, %cst_34 [1, 2] : vector<1x16x128xf32> to vector<1xf32>
      %42 = vector.shape_cast %41 : vector<1xf32> to vector<1x1x1xf32>
      %43 = vector.extract %42[0, 0, 0] : f32 from vector<1x1x1xf32>
      %44 = vector.broadcast %43 : f32 to vector<1x1x1xf32>
      %c0_35 = arith.constant 0 : index
      %c0_36 = arith.constant 0 : index
      %c0_37 = arith.constant 0 : index
      %45 = vector.load %arg6[%c0_35, %c0_36, %c0_37] : memref<1x1x1xf32, #tpu.memory_space<vmem>>, vector<1x1x1xf32>
      tpu.vector_store %arg6[%c0_35, %c0_36, %c0_37], %44 {strides = array<i32>} : memref<1x1x1xf32, #tpu.memory_space<vmem>>, vector<1x1x1xf32>,
    } else {
    }
    return
  }
  func.func @transform_0(%arg0: i32, %arg1: i32) -> (i32, i32) {
    %c1_i32 = arith.constant 1 : i32
    %0 = arith.muli %arg0, %c1_i32 : i32
    %1 = arith.addi %0, %arg1 : i32
    %c0_i32 = arith.constant 0 : i32
    %c0_i32_0 = arith.constant 0 : i32
    return %1, %c0_i32 : i32, i32
  }
  func.func @transform_1(%arg0: i32, %arg1: i32) -> (i32, i32) {
    %c1_i32 = arith.constant 1 : i32
    %0 = arith.muli %arg0, %c1_i32 : i32
    %1 = arith.addi %0, %arg1 : i32
    %c0_i32 = arith.constant 0 : i32
    %c0_i32_0 = arith.constant 0 : i32
    return %1, %c0_i32 : i32, i32
  }
  func.func @transform_2(%arg0: i32, %arg1: i32) -> (i32, i32, i32) {
    %c0_i32 = arith.constant 0 : i32
    %c0_i32_0 = arith.constant 0 : i32
    %c0_i32_1 = arith.constant 0 : i32
    return %arg0, %c0_i32, %c0_i32_0 : i32, i32, i32
  }
  func.func @transform_3(%arg0: i32, %arg1: i32) -> (i32, i32, i32) {
    %c0_i32 = arith.constant 0 : i32
    %c0_i32_0 = arith.constant 0 : i32
    %c0_i32_1 = arith.constant 0 : i32
    return %arg0, %c0_i32, %c0_i32_0 : i32, i32, i32
  }
  func.func @transform_4(%arg0: i32, %arg1: i32) -> (i32, i32, i32) {
    %c0_i32 = arith.constant 0 : i32
    %c0_i32_0 = arith.constant 0 : i32
    %c0_i32_1 = arith.constant 0 : i32
    return %arg0, %c0_i32, %c0_i32_0 : i32, i32, i32
  }
}

</mosaic_0001>

<llo_original>
// kernel: tpu_custom_call.1
$region0: #{tpu_custom_call.1}
  #allocation0 [shape = 'u32[]', space=smem, size = 0x4, offset = 0x4, fixed_abs, tag = 'smem constant byte address 0x4 - core index']
  #allocation1 [shape = 'u32[144,128]{1,0:T(1,128)}', space=vmem, size = 0x12000, scoped, tag = 'internal scratch']
  #allocation2 [shape = 'f32[16,128]{1,0:T(8,128)}', space=vmem, size = 0x2000, scoped, tag = 'scratch operand']
  #allocation3 [shape = 'f32[16,128]{1,0:T(8,128)}', space=vmem, size = 0x2000, scoped, tag = 'scratch operand']
  #allocation4 [shape = 'f32[16,128]{1,0:T(8,128)}', space=vmem, size = 0x2000, scoped, tag = 'scratch operand']
  %s0 = inlined_call_operand.hbm [shape: f32[16,128], index: 0, kind: input, shape index: {}]
  %s1 = inlined_call_operand.hbm [shape: f32[16,128], index: 1, kind: input, shape index: {}]
  %s2 = inlined_call_operand.hbm [shape: f32[1,1,1], index: 2, kind: output, shape index: {0}]
  %s3 = inlined_call_operand.hbm [shape: f32[1,1,1], index: 3, kind: output, shape index: {1}]
  %s4 = inlined_call_operand.hbm [shape: f32[1,1,1], index: 4, kind: output, shape index: {2}]
  %5 = xla_tuple %s2, %s3, %s4
  %s6 = sld [smem:[#allocation0]]
  $region50: #{tpu_custom_call.1} parent=0
    _
  %s8 = ssub.s32 1, %s6
  %s9 = scalar_select 0, %s8, %s6
  $region1: #{tpu_custom_call.1} parent=0
    #allocation5 [shape = 'u8[8192]{0}', space=vmem, size = 0x2000, scoped, tag = 'input window, operand 0, single buffered']
    #allocation6 [shape = 's32[1]{0}', space=sflag, size = 0x4, scoped, tag = 'scoped memory for tpu_custom_call.1']
    #allocation7 [shape = 's32[1]{0}', space=sflag, size = 0x4, scoped, tag = 'scoped memory for tpu_custom_call.1']
    #allocation8 [shape = 'u8[8192]{0}', space=vmem, size = 0x2000, scoped, tag = 'input window, operand 1, single buffered']
    #allocation9 [shape = 's32[1]{0}', space=sflag, size = 0x4, scoped, tag = 'scoped memory for tpu_custom_call.1']
    #allocation10 [shape = 'u8[512]{0}', space=vmem, size = 0x400, scoped, tag = 'output window, operand 0, single buffered']
    #allocation11 [shape = 'u8[512]{0}', space=vmem, size = 0x400, scoped, tag = 'output window, operand 1, single buffered']
    #allocation12 [shape = 's32[1]{0}', space=sflag, size = 0x4, scoped, tag = 'scoped memory for tpu_custom_call.1']
    #allocation13 [shape = 'u8[512]{0}', space=vmem, size = 0x400, scoped, tag = 'output window, operand 2, single buffered']
    %10 = vsyncpa [#allocation6], 0
    %11 = vsyncpa [#allocation9], 0
    %12 = vsyncpa [#allocation7], 0
    %13 = vsyncpa [#allocation12], 0
    // Predicated region
    $region2: #{tpu_custom_call.1} parent=1 // pred_check
      _
    $region3: #{tpu_custom_call.1} parent=1 // pred_check_branch
      %15 = sbr.rel (0) target = $region5
    $region4: #{tpu_custom_call.1} parent=1 // pred_region
      %s16 = sadd.s32 0, 0
      %s17 = smul.u32 2, %s16
      %s19 = ssub.s32 256, 256
      %20 = vsyncadd [#allocation6], %s19
      %s21 = smul.addr %s17, 128
      %s22 = scalar_lea.hbm %s0, %s21
      %s23 = sshll.u32 [#allocation5], 4
      %s24 = int_to_ptr.vmem [resolvable:$true] %s23
      %29 = dma.hbm_to_vmem [thread:$0]  %s22, 256, %s24, [#allocation6], 128, 128, 8
    $region5: #{tpu_custom_call.1} parent=1 // pred_fallthru
      _
    // Predicated region
    $region6: #{tpu_custom_call.1} parent=1 // pred_check
      _
    $region7: #{tpu_custom_call.1} parent=1 // pred_check_branch
      %31 = sbr.rel (0) target = $region9
    $region8: #{tpu_custom_call.1} parent=1 // pred_region
      %s32 = sadd.s32 0, 0
      %s33 = smul.u32 2, %s32
      %s35 = ssub.s32 256, 256
      %36 = vsyncadd [#allocation9], %s35
      %s37 = smul.addr %s33, 128
      %s38 = scalar_lea.hbm %s1, %s37
      %s39 = sshll.u32 [#allocation8], 4
      %s40 = int_to_ptr.vmem [resolvable:$true] %s39
      %45 = dma.hbm_to_vmem [thread:$0]  %s38, 256, %s40, [#allocation9], 128, 128, 8
    $region9: #{tpu_custom_call.1} parent=1 // pred_fallthru
      _
    // Predicated region
    $region10: #{tpu_custom_call.1} parent=1 // pred_check
      _
    $region11: #{tpu_custom_call.1} parent=1 // pred_check_branch
      %47 = sbr.rel (0) target = $region13
    $region12: #{tpu_custom_call.1} parent=1 // pred_region
      %48 = dma.done [#allocation6], 256
    $region13: #{tpu_custom_call.1} parent=1 // pred_fallthru
      _
    // Predicated region
    $region14: #{tpu_custom_call.1} parent=1 // pred_check
      _
    $region15: #{tpu_custom_call.1} parent=1 // pred_check_branch
      %50 = sbr.rel (0) target = $region17
    $region16: #{tpu_custom_call.1} parent=1 // pred_region
      %51 = dma.done [#allocation9], 256
    $region17: #{tpu_custom_call.1} parent=1 // pred_fallthru
      _
    %s52 = sadd.s32 0, 0
    %s53 = smul.u32 2, %s52
    %s54 = sadd.s32 0, 0
    %s55 = smul.u32 2, %s54
    %p56 = scmp.eq.s32.totalorder 0, 0
    // Predicated region
    $region18: #{tpu_custom_call.1} parent=1 // pred_check
      %p57 = pneg %p56
    $region19: #{tpu_custom_call.1} parent=1 // pred_check_branch
      %59 = sbr.rel (%p57) target = $region21
    $region20: #{tpu_custom_call.1} parent=1 // pred_region
      %60 = vst [vmem:[#allocation2] sm:$0xff] 0.0
      %61 = vst [vmem:[#allocation2 + $0x8] sm:$0xff] 0.0
      %62 = vst [vmem:[#allocation3] sm:$0xff] 0.0
      %63 = vst [vmem:[#allocation3 + $0x8] sm:$0xff] 0.0
      %64 = vst [vmem:[#allocation4] sm:$0xff] 0.0
      %65 = vst [vmem:[#allocation4 + $0x8] sm:$0xff] 0.0
    $region21: #{tpu_custom_call.1} parent=1 // pred_fallthru
      _
    %v66 = vld [vmem:[#allocation5] sm:$0xff]
    %v67 = vld [vmem:[#allocation5 + $0x8] sm:$0xff]
    %v68 = vld [vmem:[#allocation8] sm:$0xff]
    %v69 = vld [vmem:[#allocation8 + $0x8] sm:$0xff]
    %v70 = vmul.f32 %v66, 0.5
    %v71 = vmul.f32 %v67, 0.5
    %v72 = vtanh.pop %v70
    %v73 = vtanh.pop %v71
    %v74 = vadd.f32 %v72, 1.0
    %v75 = vadd.f32 %v73, 1.0
    %v76 = vmul.f32 %v74, 0.5
    %v77 = vmul.f32 %v75, 0.5
    %v78 = vld [vmem:[#allocation2] sm:$0xff]
    %v79 = vld [vmem:[#allocation2 + $0x8] sm:$0xff]
    %v80 = vadd.f32 %v78, %v76
    %v81 = vadd.f32 %v79, %v77
    %82 = vst [vmem:[#allocation2] sm:$0xff] %v80
    %83 = vst [vmem:[#allocation2 + $0x8] sm:$0xff] %v81
    %v84 = vld [vmem:[#allocation3] sm:$0xff]
    %v85 = vld [vmem:[#allocation3 + $0x8] sm:$0xff]
    %v86 = vadd.f32 %v84, %v68
    %v87 = vadd.f32 %v85, %v69
    %88 = vst [vmem:[#allocation3] sm:$0xff] %v86
    %89 = vst [vmem:[#allocation3 + $0x8] sm:$0xff] %v87
    %v90 = vld [vmem:[#allocation4] sm:$0xff]
    %v91 = vld [vmem:[#allocation4 + $0x8] sm:$0xff]
    %v92 = vmul.f32 %v76, %v68
    %v93 = vmul.f32 %v77, %v69
    %v94 = vadd.f32 %v90, %v92
    %v95 = vadd.f32 %v91, %v93
    %96 = vst [vmem:[#allocation4] sm:$0xff] %v94
    %97 = vst [vmem:[#allocation4 + $0x8] sm:$0xff] %v95
    // Predicated region
    $region22: #{tpu_custom_call.1} parent=1 // pred_check
      %p98 = pneg %p56
    $region23: #{tpu_custom_call.1} parent=1 // pred_check_branch
      %100 = sbr.rel (%p98) target = $region25
    $region24: #{tpu_custom_call.1} parent=1 // pred_region
      %v101 = vld [vmem:[#allocation2] sm:$0xff]
      %v102 = vld [vmem:[#allocation2 + $0x8] sm:$0xff]
      %v103 = vadd.f32 %v101, %v102
      %104 = vadd.xlane.f32.xlu0 %v103
      %v105 = vpop.xlane.xlu0 %104
      %v106 = vrot.slane %v105, 4
      %v107 = vadd.f32 %v105, %v106
      %v108 = vrot.slane %v107, 2
      %v109 = vadd.f32 %v107, %v108
      %v110 = vrot.slane %v109, 1
      %v111 = vadd.f32 %v109, %v110
      %s112 = vtos %v111
      %v113 = vstv %s112
      %vm114 = vcmask 0
      %115 = vst.msk [vmem:[#allocation10] sm:$0x1] %vm114, %v113
      %v116 = vld [vmem:[#allocation3] sm:$0xff]
      %v117 = vld [vmem:[#allocation3 + $0x8] sm:$0xff]
      %v118 = vadd.f32 %v116, %v117
      %119 = vadd.xlane.f32.xlu0 %v118
      %v120 = vpop.xlane.xlu0 %119
      %v121 = vrot.slane %v120, 4
      %v122 = vadd.f32 %v120, %v121
      %v123 = vrot.slane %v122, 2
      %v124 = vadd.f32 %v122, %v123
      %v125 = vrot.slane %v124, 1
      %v126 = vadd.f32 %v124, %v125
      %s127 = vtos %v126
      %v128 = vstv %s127
      %129 = vst.msk [vmem:[#allocation11] sm:$0x1] %vm114, %v128
      %v130 = vld [vmem:[#allocation4] sm:$0xff]
      %v131 = vld [vmem:[#allocation4 + $0x8] sm:$0xff]
      %v132 = vadd.f32 %v130, %v131
      %133 = vadd.xlane.f32.xlu0 %v132
      %v134 = vpop.xlane.xlu0 %133
      %v135 = vrot.slane %v134, 4
      %v136 = vadd.f32 %v134, %v135
      %v137 = vrot.slane %v136, 2
      %v138 = vadd.f32 %v136, %v137
      %v139 = vrot.slane %v138, 1
      %v140 = vadd.f32 %v138, %v139
      %s141 = vtos %v140
      %v142 = vstv %s141
      %143 = vst.msk [vmem:[#allocation13] sm:$0x1] %vm114, %v142
    $region25: #{tpu_custom_call.1} parent=1 // pred_fallthru
      _
    // Predicated region
    $region26: #{tpu_custom_call.1} parent=1 // pred_check
      _
    $region27: #{tpu_custom_call.1} parent=1 // pred_check_branch
      %145 = sbr.rel (0) target = $region29
    $region28: #{tpu_custom_call.1} parent=1 // pred_region
      %s147 = ssub.s32 16, 16
      %148 = vsyncadd [#allocation7], %s147
      %s150 = sshll.u32 [#allocation10], 4
      %s151 = int_to_ptr.vmem [resolvable:$true] %s150
      %153 = dma.vmem_to_hbm [thread:$0]  %s151, 16, %s2, [#allocation7]
    $region29: #{tpu_custom_call.1} parent=1 // pred_fallthru
      _
    // Predicated region
    $region30: #{tpu_custom_call.1} parent=1 // pred_check
      _
    $region31: #{tpu_custom_call.1} parent=1 // pred_check_branch
      %155 = sbr.rel (0) target = $region33
    $region32: #{tpu_custom_call.1} parent=1 // pred_region
      %s157 = ssub.s32 16, 16
      %158 = vsyncadd [#allocation12], %s157
      %s160 = sshll.u32 [#allocation11], 4
      %s161 = int_to_ptr.vmem [resolvable:$true] %s160
      %163 = dma.vmem_to_hbm [thread:$0]  %s161, 16, %s3, [#allocation12]
    $region33: #{tpu_custom_call.1} parent=1 // pred_fallthru
      _
    // Predicated region
    $region34: #{tpu_custom_call.1} parent=1 // pred_check
      _
    $region35: #{tpu_custom_call.1} parent=1 // pred_check_branch
      %165 = sbr.rel (0) target = $region37
    $region36: #{tpu_custom_call.1} parent=1 // pred_region
      %s167 = ssub.s32 16, 16
      %168 = vsyncadd [#allocation12], %s167
      %s170 = sshll.u32 [#allocation13], 4
      %s171 = int_to_ptr.vmem [resolvable:$true] %s170
      %173 = dma.vmem_to_hbm [thread:$0]  %s171, 16, %s4, [#allocation12]
    $region37: #{tpu_custom_call.1} parent=1 // pred_fallthru
      _
    // Predicated region
    $region38: #{tpu_custom_call.1} parent=1 // pred_check
      _
    $region39: #{tpu_custom_call.1} parent=1 // pred_check_branch
      %175 = sbr.rel (0) target = $region41
    $region40: #{tpu_custom_call.1} parent=1 // pred_region
      %176 = dma.done [#allocation7], 16
    $region41: #{tpu_custom_call.1} parent=1 // pred_fallthru
      _
    // Predicated region
    $region42: #{tpu_custom_call.1} parent=1 // pred_check
      _
    $region43: #{tpu_custom_call.1} parent=1 // pred_check_branch
      %178 = sbr.rel (0) target = $region45
    $region44: #{tpu_custom_call.1} parent=1 // pred_region
      %179 = dma.done [#allocation12], 16
    $region45: #{tpu_custom_call.1} parent=1 // pred_fallthru
      _
    // Predicated region
    $region46: #{tpu_custom_call.1} parent=1 // pred_check
      _
    $region47: #{tpu_custom_call.1} parent=1 // pred_check_branch
      %181 = sbr.rel (0) target = $region49
    $region48: #{tpu_custom_call.1} parent=1 // pred_region
      %182 = dma.done [#allocation12], 16
    $region49: #{tpu_custom_call.1} parent=1 // pred_fallthru
      _
    %183 = vsyncpa [#allocation6], 1
    %184 = vsyncpa [#allocation9], 1
    %185 = vsyncpa [#allocation7], 1
    %186 = vsyncpa [#allocation12], 1

</llo_original>
